<compile_context>
chip_gen: v5e
topology: v5e:2x2
jax: 0.10.0
libtpu: 0.0.40
codegen_flags: <defaults>
</compile_context>

<pallas_src>
import jax
import jax.numpy as jnp
from jax import lax
from jax.experimental import pallas as pl
from jax.experimental.pallas import tpu as pltpu

BN_EPS = 1e-5


# ----------------------------------------------------------------------------
# Fused Pallas kernel (lane-major layout, one image per grid step)
# ----------------------------------------------------------------------------
def _fused_upsample_call(im1, mask, w1, b1, w2, b2, w3, b3, *, Wp, S):
    """im1:  (N, 9*Cin, S) stage-1 im2col in padded-grid lane coords.
    mask: (C2, S)        1.0 at real interior grid positions, 0 at borders/pad.
    w1:   (C2, 9*Cin)    conv1, BN scale folded.        b1: (C2, 1)
    w2:   (C2, 9*C2)     conv2, BN scale folded.        b2: (C2, 1)
    w3:   (4*Cout, 4*C2) polyphase transpose conv.      b3: (4*Cout, 1)
    Returns (N, 4*Cout, S): 4 sub-pixel parities packed on sublanes, padded
    grid flattened on lanes."""
    N, K1, S_ = im1.shape
    assert S_ == S
    C2 = w1.shape[0]
    C4 = w3.shape[0]
    base = Wp + 1                                   # interior offset in the flat grid
    taps3 = [ty * Wp + tx for ty in range(3) for tx in range(3)]        # 3x3 conv taps
    taps2 = [(1 + ty) * Wp + (1 + tx) for ty in range(2) for tx in range(2)]  # 2x2 window

    def kernel(im1_ref, msk_ref, w1_ref, b1_ref, w2_ref, b2_ref,
               w3_ref, b3_ref, o_ref):
        msk = msk_ref[...]                                              # (C2, S)

        # out[G] = v[G + (k - base)]  -> lane rotation by (base - k) (XLU).
        def shifted(v, k):
            s = (base - k) % S
            return v if s == 0 else pltpu.roll(v, s, 1)

        # ---- stage 1: Conv3x3(Cin->C2) + BN + ReLU (single dot, K = 9*Cin) --
        h1 = jnp.dot(w1_ref[...], im1_ref[0], preferred_element_type=jnp.float32)
        h1 = jnp.maximum(h1 + b1_ref[...], 0.0) * msk                   # (C2, S)

        # ---- stage 2: Conv3x3(C2->C2) + BN + ReLU (single dot, K = 9*C2) ----
        im2 = jnp.concatenate([shifted(h1, k) for k in taps3], axis=0)  # (9*C2, S)
        h2 = jnp.dot(w2_ref[...], im2, preferred_element_type=jnp.float32)
        h2 = jnp.maximum(h2 + b2_ref[...], 0.0) * msk                   # (C2, S)

        # ---- stage 3: ConvTranspose(k3,s2,p1,op1) + BN + ReLU, polyphase ----
        im3 = jnp.concatenate([shifted(h2, k) for k in taps2], axis=0)  # (4*C2, S)
        y = jnp.dot(w3_ref[...], im3, preferred_element_type=jnp.float32)
        o_ref[0] = jnp.maximum(y + b3_ref[...], 0.0).astype(o_ref.dtype)

    return pl.pallas_call(
        kernel,
        out_shape=jax.ShapeDtypeStruct((N, C4, S), jnp.float32),
        grid=(N,),
        in_specs=[
            pl.BlockSpec((1, K1, S), lambda n: (n, 0, 0)),     # im2col stage 1
            pl.BlockSpec((C2, S), lambda n: (0, 0)),           # interior mask
            pl.BlockSpec((C2, K1), lambda n: (0, 0)),          # w1
            pl.BlockSpec((C2, 1), lambda n: (0, 0)),           # b1
            pl.BlockSpec((C2, 9 * C2), lambda n: (0, 0)),      # w2
            pl.BlockSpec((C2, 1), lambda n: (0, 0)),           # b2
            pl.BlockSpec((C4, 4 * C2), lambda n: (0, 0)),      # w3 (polyphase)
            pl.BlockSpec((C4, 1), lambda n: (0, 0)),           # b3
        ],
        out_specs=pl.BlockSpec((1, C4, S), lambda n: (n, 0, 0)),
        compiler_params=pltpu.CompilerParams(
            dimension_semantics=("parallel",)),
    )(im1, mask, w1, b1, w2, b2, w3, b3)


# ----------------------------------------------------------------------------
# Parameter setup (deterministic, synthetic) + BN folding + layout prep
# ----------------------------------------------------------------------------
def init_params(key, in_ch, out_ch):
    c2 = out_ch * 2
    ks = jax.random.split(key, 16)

    def nrm(k, shape, s=0.1):
        return s * jax.random.normal(k, shape, jnp.float32)

    raw = dict(
        # Conv2d(in_ch, 2*out_ch, 3, p=1) -- OIHW
        w1=nrm(ks[0], (c2, in_ch, 3, 3)), bc1=nrm(ks[1], (c2,)),
        g1=1.0 + nrm(ks[2], (c2,)), be1=nrm(ks[3], (c2,)),
        m1=nrm(ks[4], (c2,)), v1=jax.random.uniform(ks[5], (c2,), jnp.float32, 0.5, 1.5),
        # Conv2d(2*out_ch, 2*out_ch, 3, p=1)
        w2=nrm(ks[6], (c2, c2, 3, 3)), bc2=nrm(ks[7], (c2,)),
        g2=1.0 + nrm(ks[8], (c2,)), be2=nrm(ks[9], (c2,)),
        m2=nrm(ks[10], (c2,)), v2=jax.random.uniform(ks[11], (c2,), jnp.float32, 0.5, 1.5),
        # ConvTranspose2d(2*out_ch, out_ch, 3, s=2, p=1, op=1) -- (Cin, Cout, 3, 3)
        wt=nrm(ks[12], (c2, out_ch, 3, 3)), bct=nrm(ks[13], (out_ch,)),
        gt=1.0 + nrm(ks[14], (out_ch,)), bet=nrm(ks[15], (out_ch,)),
        mt=jnp.linspace(-0.1, 0.1, out_ch, dtype=jnp.float32),
        vt=jnp.linspace(0.8, 1.2, out_ch, dtype=jnp.float32),
    )

    def fold(g, be, m, v, bc):
        s = g / jnp.sqrt(v + BN_EPS)
        return s, (bc - m) * s + be

    s1, b1 = fold(raw["g1"], raw["be1"], raw["m1"], raw["v1"], raw["bc1"])
    s2, b2 = fold(raw["g2"], raw["be2"], raw["m2"], raw["v2"], raw["bc2"])
    s3, b3 = fold(raw["gt"], raw["bet"], raw["mt"], raw["vt"], raw["bct"])

    # Conv weights -> (Cout, 9*Cin) matrices, taps major on K, BN scale folded.
    w1_hwio = jnp.transpose(raw["w1"], (2, 3, 1, 0)) * s1[None, None, None, :]
    w2_hwio = jnp.transpose(raw["w2"], (2, 3, 1, 0)) * s2[None, None, None, :]
    w1_mat = jnp.transpose(w1_hwio.reshape(9, in_ch, c2), (2, 0, 1)).reshape(c2, 9 * in_ch)
    w2_mat = jnp.transpose(w2_hwio.reshape(9, c2, c2), (2, 0, 1)).reshape(c2, 9 * c2)

    # Transpose conv -> polyphase weights over a 2x2 window of h2 (bottom/right
    # zero-padded); 4 output parities [EE,EO,OE,OO] packed per output channel.
    wf = jnp.transpose(jnp.flip(raw["wt"], axis=(2, 3)), (2, 3, 0, 1))   # (3,3,C2,Cout)
    Z = jnp.zeros((c2, out_ch), jnp.float32)
    w3_taps = jnp.stack([
        jnp.concatenate([wf[1, 1], wf[1, 0], wf[0, 1], wf[0, 0]], axis=1),  # tap (0,0)
        jnp.concatenate([Z,        wf[1, 2], Z,        wf[0, 2]], axis=1),  # tap (0,1)
        jnp.concatenate([Z,        Z,        wf[2, 1], wf[2, 0]], axis=1),  # tap (1,0)
        jnp.concatenate([Z,        Z,        Z,        wf[2, 2]], axis=1),  # tap (1,1)
    ], axis=0)                                                    # (4, C2, 4*Cout)
    w3_taps = w3_taps * jnp.tile(s3, 4)[None, None, :]
    w3_mat = jnp.transpose(w3_taps, (2, 0, 1)).reshape(4 * out_ch, 4 * c2)

    params = dict(
        w1=w1_mat, b1=b1.reshape(c2, 1),
        w2=w2_mat, b2=b2.reshape(c2, 1),
        w3=w3_mat, b3=jnp.tile(b3, 4).reshape(4 * out_ch, 1),
    )
    return raw, params


# ----------------------------------------------------------------------------
# Forward pass (matches UpSampleLayer.forward)
# ----------------------------------------------------------------------------
def upsample_layer_forward(params, x_nchw, skip_nchw):
    N, Cin, H, W = x_nchw.shape
    C2 = params["w1"].shape[0]
    C4 = params["w3"].shape[0]
    out_ch = C4 // 4
    Hp, Wp = H + 2, W + 2
    SG = Hp * Wp                          # flattened padded grid size (324)
    base = Wp + 1                         # interior offset in the flat grid (19)
    S = ((SG + 2 + 127) // 128) * 128     # lane-padded grid size (384)

    x = x_nchw.astype(jnp.float32)
    # Padded input image, channel-major, grid flattened row-major on the last axis.
    xg = jnp.pad(x, ((0, 0), (0, 0), (1, 1), (1, 1))).reshape(N, Cin, SG)
    # Stage-1 im2col in grid-lane coords: im1[n, t*Cin+c, G] = x_grid[n, c, G - base + k_t]
    xg_pad = jnp.pad(xg, ((0, 0), (0, 0), (base, S)))
    taps = [xg_pad[:, :, k:k + S]
            for k in (ty * Wp + tx for ty in range(3) for tx in range(3))]
    im1 = jnp.stack(taps, axis=1).reshape(N, 9 * Cin, S)

    # Interior mask (1 at real conv-output grid positions), pre-broadcast to C2 rows.
    g = jnp.arange(S, dtype=jnp.int32)
    gi, gj = g // Wp, g % Wp
    mask = (g < SG) & (gi >= 1) & (gi <= H) & (gj >= 1) & (gj <= W)
    mask = jnp.broadcast_to(mask.astype(jnp.float32)[None, :], (C2, S))

    out = _fused_upsample_call(
        im1, mask, params["w1"], params["b1"], params["w2"], params["b2"],
        params["w3"], params["b3"], Wp=Wp, S=S)                       # (N, 4*Cout, S)

    # Unpack: channels = (py, px, o), lanes = padded grid; drop borders, interleave.
    y = out[:, :, :SG].reshape(N, 2, 2, out_ch, Hp, Wp)[:, :, :, :, 1:H + 1, 1:W + 1]
    y = jnp.transpose(y, (0, 3, 4, 1, 5, 2)).reshape(N, out_ch, 2 * H, 2 * W)
    return jnp.concatenate([y, skip_nchw.astype(jnp.float32)], axis=1)


# ----------------------------------------------------------------------------
# Pure-JAX (XLA) reference for validation
# ----------------------------------------------------------------------------
def reference_forward(raw, x, out, eps=BN_EPS):
    dn = ("NCHW", "OIHW", "NCHW")
    hi = lax.Precision.HIGHEST

    def bn_relu(y, g, b, m, v):
        sc = (g / jnp.sqrt(v + eps))[None, :, None, None]
        return jnp.maximum((y - m[None, :, None, None]) * sc + b[None, :, None, None], 0.0)

    y = lax.conv_general_dilated(x, raw["w1"], (1, 1), ((1, 1), (1, 1)),
                                 dimension_numbers=dn, precision=hi)
    y = bn_relu(y + raw["bc1"][None, :, None, None], raw["g1"], raw["be1"], raw["m1"], raw["v1"])
    y = lax.conv_general_dilated(y, raw["w2"], (1, 1), ((1, 1), (1, 1)),
                                 dimension_numbers=dn, precision=hi)
    y = bn_relu(y + raw["bc2"][None, :, None, None], raw["g2"], raw["be2"], raw["m2"], raw["v2"])
    wt_conv = jnp.transpose(jnp.flip(raw["wt"], axis=(2, 3)), (1, 0, 2, 3))   # OIHW
    y = lax.conv_general_dilated(y, wt_conv, (1, 1), ((1, 2), (1, 2)),
                                 lhs_dilation=(2, 2), dimension_numbers=dn, precision=hi)
    y = bn_relu(y + raw["bct"][None, :, None, None], raw["gt"], raw["bet"], raw["mt"], raw["vt"])
    return jnp.concatenate([y, out], axis=1)


if __name__ == "__main__":
    in_ch, out_ch = 4, 4
    N, H, W = 2, 16, 16

    key = jax.random.PRNGKey(0)
    kx, kskip, kparams = jax.random.split(key, 3)
    x = jax.random.normal(kx, (N, in_ch, H, W), jnp.float32)              # NCHW
    skip = jax.random.normal(kskip, (N, out_ch, 2 * H, 2 * W), jnp.float32)

    raw, params = init_params(kparams, in_ch, out_ch)

    fwd = jax.jit(upsample_layer_forward)
    result = jax.block_until_ready(fwd(params, x, skip))

    expected = jax.block_until_ready(reference_forward(raw, x, skip))

    assert result.shape == (N, 2 * out_ch, 2 * H, 2 * W), result.shape
    max_err = float(jnp.max(jnp.abs(result - expected)))
    assert jnp.allclose(result, expected, rtol=1e-3, atol=1e-3), max_err

    print("KERNEL_OK")
</pallas_src>

<mosaic_0001>
module attributes {stable_mosaic.version = 11 : i64} {
  func.func @kernel(%arg0: i32, %arg1: memref<1x36x384xf32, #tpu.memory_space<vmem>>, %arg2: memref<8x384xf32, #tpu.memory_space<vmem>>, %arg3: memref<8x36xf32, #tpu.memory_space<vmem>>, %arg4: memref<8x1xf32, #tpu.memory_space<vmem>>, %arg5: memref<8x72xf32, #tpu.memory_space<vmem>>, %arg6: memref<8x1xf32, #tpu.memory_space<vmem>>, %arg7: memref<16x32xf32, #tpu.memory_space<vmem>>, %arg8: memref<16x1xf32, #tpu.memory_space<vmem>>, %arg9: memref<1x16x384xf32, #tpu.memory_space<vmem>>) attributes {dimension_semantics = [#tpu.dimension_semantics<parallel>], iteration_bounds = array<i64: 2>, scalar_prefetch = 0 : i64, scratch_operands = 0 : i64, tpu.core_type = #tpu.core_type<tc>, window_params = [{transform_indices = @transform_0, window_bounds = array<i64: 1, 36, 384>}, {pipeline_mode = #tpu.pipeline_mode<synchronous>, transform_indices = @transform_1, window_bounds = array<i64: 8, 384>}, {pipeline_mode = #tpu.pipeline_mode<synchronous>, transform_indices = @transform_2, window_bounds = array<i64: 8, 36>}, {pipeline_mode = #tpu.pipeline_mode<synchronous>, transform_indices = @transform_3, window_bounds = array<i64: 8, 1>}, {pipeline_mode = #tpu.pipeline_mode<synchronous>, transform_indices = @transform_4, window_bounds = array<i64: 8, 72>}, {pipeline_mode = #tpu.pipeline_mode<synchronous>, transform_indices = @transform_5, window_bounds = array<i64: 8, 1>}, {pipeline_mode = #tpu.pipeline_mode<synchronous>, transform_indices = @transform_6, window_bounds = array<i64: 16, 32>}, {pipeline_mode = #tpu.pipeline_mode<synchronous>, transform_indices = @transform_7, window_bounds = array<i64: 16, 1>}, {transform_indices = @transform_8, window_bounds = array<i64: 1, 16, 384>}]} {
    %c0 = arith.constant 0 : index
    %c0_0 = arith.constant 0 : index
    %0 = vector.load %arg2[%c0, %c0_0] : memref<8x384xf32, #tpu.memory_space<vmem>>, vector<8x384xf32>
    %c0_1 = arith.constant 0 : index
    %c0_2 = arith.constant 0 : index
    %1 = vector.load %arg3[%c0_1, %c0_2] : memref<8x36xf32, #tpu.memory_space<vmem>>, vector<8x36xf32>
    %c0_3 = arith.constant 0 : index
    %c0_4 = arith.constant 0 : index
    %c0_5 = arith.constant 0 : index
    %2 = vector.load %arg1[%c0_3, %c0_4, %c0_5] : memref<1x36x384xf32, #tpu.memory_space<vmem>>, vector<1x36x384xf32>
    %3 = vector.shape_cast %2 : vector<1x36x384xf32> to vector<36x384xf32>
    %cst = arith.constant dense<0.000000e+00> : vector<8x384xf32>
    %4 = tpu.matmul %1, %3, %cst {dimension_numbers = #tpu.dot_dimension_numbers<[1], [0], [0], [1], [0, 0, 1, 1], [], []>} : vector<8x36xf32>, vector<36x384xf32>, vector<8x384xf32> -> vector<8x384xf32>
    %c0_6 = arith.constant 0 : index
    %c0_7 = arith.constant 0 : index
    %5 = vector.load %arg4[%c0_6, %c0_7] : memref<8x1xf32, #tpu.memory_space<vmem>>, vector<8x1xf32>
    %6 = vector.broadcast %5 : vector<8x1xf32> to vector<8x384xf32>
    %7 = arith.addf %4, %6 : vector<8x384xf32>
    %cst_8 = arith.constant 0.000000e+00 : f32
    %8 = vector.broadcast %cst_8 : f32 to vector<8x384xf32>
    %9 = arith.maximumf %7, %8 : vector<8x384xf32>
    %10 = arith.mulf %9, %0 : vector<8x384xf32>
    %c19_i32 = arith.constant 19 : i32
    %11 = tpu.dynamic_rotate %10 by %c19_i32 dim 1 : vector<8x384xf32>, i32 -> vector<8x384xf32>
    %c18_i32 = arith.constant 18 : i32
    %12 = tpu.dynamic_rotate %10 by %c18_i32 dim 1 : vector<8x384xf32>, i32 -> vector<8x384xf32>
    %c17_i32 = arith.constant 17 : i32
    %13 = tpu.dynamic_rotate %10 by %c17_i32 dim 1 : vector<8x384xf32>, i32 -> vector<8x384xf32>
    %c1_i32 = arith.constant 1 : i32
    %14 = tpu.dynamic_rotate %10 by %c1_i32 dim 1 : vector<8x384xf32>, i32 -> vector<8x384xf32>
    %c383_i32 = arith.constant 383 : i32
    %15 = tpu.dynamic_rotate %10 by %c383_i32 dim 1 : vector<8x384xf32>, i32 -> vector<8x384xf32>
    %c367_i32 = arith.constant 367 : i32
    %16 = tpu.dynamic_rotate %10 by %c367_i32 dim 1 : vector<8x384xf32>, i32 -> vector<8x384xf32>
    %c366_i32 = arith.constant 366 : i32
    %17 = tpu.dynamic_rotate %10 by %c366_i32 dim 1 : vector<8x384xf32>, i32 -> vector<8x384xf32>
    %c365_i32 = arith.constant 365 : i32
    %18 = tpu.dynamic_rotate %10 by %c365_i32 dim 1 : vector<8x384xf32>, i32 -> vector<8x384xf32>
    %19 = tpu.concatenate %11, %12, %13, %14, %10, %15, %16, %17, %18 in 0 : vector<8x384xf32>, vector<8x384xf32>, vector<8x384xf32>, vector<8x384xf32>, vector<8x384xf32>, vector<8x384xf32>, vector<8x384xf32>, vector<8x384xf32>, vector<8x384xf32> -> vector<72x384xf32>
    %c0_9 = arith.constant 0 : index
    %c0_10 = arith.constant 0 : index
    %20 = vector.load %arg5[%c0_9, %c0_10] : memref<8x72xf32, #tpu.memory_space<vmem>>, vector<8x72xf32>
    %cst_11 = arith.constant dense<0.000000e+00> : vector<8x384xf32>
    %21 = tpu.matmul %20, %19, %cst_11 {dimension_numbers = #tpu.dot_dimension_numbers<[1], [0], [0], [1], [0, 0, 1, 1], [], []>} : vector<8x72xf32>, vector<72x384xf32>, vector<8x384xf32> -> vector<8x384xf32>
    %c0_12 = arith.constant 0 : index
    %c0_13 = arith.constant 0 : index
    %22 = vector.load %arg6[%c0_12, %c0_13] : memref<8x1xf32, #tpu.memory_space<vmem>>, vector<8x1xf32>
    %23 = vector.broadcast %22 : vector<8x1xf32> to vector<8x384xf32>
    %24 = arith.addf %21, %23 : vector<8x384xf32>
    %cst_14 = arith.constant 0.000000e+00 : f32
    %25 = vector.broadcast %cst_14 : f32 to vector<8x384xf32>
    %26 = arith.maximumf %24, %25 : vector<8x384xf32>
    %27 = arith.mulf %26, %0 : vector<8x384xf32>
    %c383_i32_15 = arith.constant 383 : i32
    %28 = tpu.dynamic_rotate %27 by %c383_i32_15 dim 1 : vector<8x384xf32>, i32 -> vector<8x384xf32>
    %c366_i32_16 = arith.constant 366 : i32
    %29 = tpu.dynamic_rotate %27 by %c366_i32_16 dim 1 : vector<8x384xf32>, i32 -> vector<8x384xf32>
    %c365_i32_17 = arith.constant 365 : i32
    %30 = tpu.dynamic_rotate %27 by %c365_i32_17 dim 1 : vector<8x384xf32>, i32 -> vector<8x384xf32>
    %31 = tpu.concatenate %27, %28, %29, %30 in 0 : vector<8x384xf32>, vector<8x384xf32>, vector<8x384xf32>, vector<8x384xf32> -> vector<32x384xf32>
    %c0_18 = arith.constant 0 : index
    %c0_19 = arith.constant 0 : index
    %32 = vector.load %arg7[%c0_18, %c0_19] : memref<16x32xf32, #tpu.memory_space<vmem>>, vector<16x32xf32>
    %cst_20 = arith.constant dense<0.000000e+00> : vector<16x384xf32>
    %33 = tpu.matmul %32, %31, %cst_20 {dimension_numbers = #tpu.dot_dimension_numbers<[1], [0], [0], [1], [0, 0, 1, 1], [], []>} : vector<16x32xf32>, vector<32x384xf32>, vector<16x384xf32> -> vector<16x384xf32>
    %c0_21 = arith.constant 0 : index
    %c0_22 = arith.constant 0 : index
    %34 = vector.load %arg8[%c0_21, %c0_22] : memref<16x1xf32, #tpu.memory_space<vmem>>, vector<16x1xf32>
    %35 = vector.broadcast %34 : vector<16x1xf32> to vector<16x384xf32>
    %36 = arith.addf %33, %35 : vector<16x384xf32>
    %cst_23 = arith.constant 0.000000e+00 : f32
    %37 = vector.broadcast %cst_23 : f32 to vector<16x384xf32>
    %38 = arith.maximumf %36, %37 : vector<16x384xf32>
    %c0_24 = arith.constant 0 : index
    %c0_25 = arith.constant 0 : index
    %c0_26 = arith.constant 0 : index
    %39 = vector.load %arg9[%c0_24, %c0_25, %c0_26] : memref<1x16x384xf32, #tpu.memory_space<vmem>>, vector<1x16x384xf32>
    %40 = vector.shape_cast %39 : vector<1x16x384xf32> to vector<16x384xf32>
    %41 = vector.shape_cast %38 : vector<16x384xf32> to vector<1x16x384xf32>
    tpu.vector_store %arg9[%c0_24, %c0_25, %c0_26], %41 {strides = array<i32>} : memref<1x16x384xf32, #tpu.memory_space<vmem>>, vector<1x16x384xf32>,
    return
  }
  func.func @transform_0(%arg0: i32) -> (i32, i32, i32) {
    %c0_i32 = arith.constant 0 : i32
    %c0_i32_0 = arith.constant 0 : i32
    %c0_i32_1 = arith.constant 0 : i32
    return %arg0, %c0_i32, %c0_i32_0 : i32, i32, i32
  }
  func.func @transform_1(%arg0: i32) -> (i32, i32) {
    %c0_i32 = arith.constant 0 : i32
    %c0_i32_0 = arith.constant 0 : i32
    %c0_i32_1 = arith.constant 0 : i32
    return %c0_i32, %c0_i32_0 : i32, i32
  }
  func.func @transform_2(%arg0: i32) -> (i32, i32) {
    %c0_i32 = arith.constant 0 : i32
    %c0_i32_0 = arith.constant 0 : i32
    %c0_i32_1 = arith.constant 0 : i32
    return %c0_i32, %c0_i32_0 : i32, i32
  }
  func.func @transform_3(%arg0: i32) -> (i32, i32) {
    %c0_i32 = arith.constant 0 : i32
    %c0_i32_0 = arith.constant 0 : i32
    %c0_i32_1 = arith.constant 0 : i32
    return %c0_i32, %c0_i32_0 : i32, i32
  }
  func.func @transform_4(%arg0: i32) -> (i32, i32) {
    %c0_i32 = arith.constant 0 : i32
    %c0_i32_0 = arith.constant 0 : i32
    %c0_i32_1 = arith.constant 0 : i32
    return %c0_i32, %c0_i32_0 : i32, i32
  }
  func.func @transform_5(%arg0: i32) -> (i32, i32) {
    %c0_i32 = arith.constant 0 : i32
    %c0_i32_0 = arith.constant 0 : i32
    %c0_i32_1 = arith.constant 0 : i32
    return %c0_i32, %c0_i32_0 : i32, i32
  }
  func.func @transform_6(%arg0: i32) -> (i32, i32) {
    %c0_i32 = arith.constant 0 : i32
    %c0_i32_0 = arith.constant 0 : i32
    %c0_i32_1 = arith.constant 0 : i32
    return %c0_i32, %c0_i32_0 : i32, i32
  }
  func.func @transform_7(%arg0: i32) -> (i32, i32) {
    %c0_i32 = arith.constant 0 : i32
    %c0_i32_0 = arith.constant 0 : i32
    %c0_i32_1 = arith.constant 0 : i32
    return %c0_i32, %c0_i32_0 : i32, i32
  }
  func.func @transform_8(%arg0: i32) -> (i32, i32, i32) {
    %c0_i32 = arith.constant 0 : i32
    %c0_i32_0 = arith.constant 0 : i32
    %c0_i32_1 = arith.constant 0 : i32
    return %arg0, %c0_i32, %c0_i32_0 : i32, i32, i32
  }
}

</mosaic_0001>

<llo_original>
// kernel: upsample_layer_forward.1
$region0: #{upsample_layer_forward.1}
  #allocation0 [shape = 'u32[]', space=smem, size = 0x4, offset = 0x4, fixed_abs, tag = 'smem constant byte address 0x4 - core index']
  #allocation1 [shape = 'u32[72,128]{1,0:T(1,128)}', space=vmem, size = 0x9000, scoped, tag = 'internal scratch']
  %s0 = inlined_call_operand.vmem [shape: f32[2,36,384], index: 0, kind: input, shape index: {}]
  %s1 = inlined_call_operand.vmem [shape: f32[8,384], index: 1, kind: input, shape index: {}]
  %s2 = inlined_call_operand.vmem [shape: f32[8,36], index: 2, kind: input, shape index: {}]
  %s3 = inlined_call_operand.vmem [shape: f32[8,1], index: 3, kind: input, shape index: {}]
  %s4 = inlined_call_operand.vmem [shape: f32[8,72], index: 4, kind: input, shape index: {}]
  %s5 = inlined_call_operand.vmem [shape: f32[8,1], index: 5, kind: input, shape index: {}]
  %s6 = inlined_call_operand.vmem [shape: f32[16,32], index: 6, kind: input, shape index: {}]
  %s7 = inlined_call_operand.vmem [shape: f32[16,1], index: 7, kind: input, shape index: {}]
  %s8 = inlined_call_operand.vmem [shape: f32[2,16,384], index: 8, kind: output, shape index: {}]
  %s9 = sld [smem:[#allocation0]]
  $region65: #{upsample_layer_forward.1} parent=0
    _
  %s11 = ssub.s32 1, %s9
  %s12 = scalar_select 0, %s11, %s9
  loop: start=0, step=1, limit=4
  $region2: #{upsample_layer_forward.1} parent=0 // loop_pre_header
    _
  $region3: #{upsample_layer_forward.1} parent=0 // loop_header
    %s14 = sphi 0, %s18
    %p15 = scmp.ge.s32.totalorder %s14, 4
    %s24 = sphi 0, %s26
    %s27 = sphi 0, %s24
    %s28 = sphi 0, %s27
    %s44 = sphi 0, %s28
    %s48 = sphi 0, %s48
    %s50 = sphi 0, %s48
    %s51 = sphi 0, %s50
    %s65 = sphi 0, %s51
    %s69 = sphi 0, %s69
    %s71 = sphi 0, %s69
    %s72 = sphi 0, %s71
    %s86 = sphi 0, %s72
    %s90 = sphi 0, %s90
    %s92 = sphi 0, %s90
    %s93 = sphi 0, %s92
    %s107 = sphi 0, %s93
    %s111 = sphi 0, %s111
    %s113 = sphi 0, %s111
    %s114 = sphi 0, %s113
    %s128 = sphi 0, %s114
    %s132 = sphi 0, %s132
    %s134 = sphi 0, %s132
    %s135 = sphi 0, %s134
    %s149 = sphi 0, %s135
    %s153 = sphi 0, %s153
    %s155 = sphi 0, %s153
    %s156 = sphi 0, %s155
    %s170 = sphi 0, %s156
    %s174 = sphi 0, %s174
    %s176 = sphi 0, %s174
    %s177 = sphi 0, %s176
    %s191 = sphi 0, %s177
    %s197 = sphi 0, %s199
    %s200 = sphi 0, %s197
    %s201 = sphi 0, %s200
    %s217 = sphi 0, %s201
  $region4: #{upsample_layer_forward.1} parent=0 // loop_header_branch
    %17 = sbr.rel (%p15) target = $region8
  $region5: #{upsample_layer_forward.1} parent=0 // loop_body
    %s19 = ssub.s32 %s14, 1
    %s20 = ssub.s32 %s14, 2
    %s21 = sadd.s32 %s14, 1
    %s22 = ssub.s32 %s14, %s21
    %p23 = scmp.eq.s32.totalorder %s22, 0
    %s25 = sadd.s32 %s24, 1
    %s26 = scalar_select %p23, %s24, %s25
    %p29 = pneg %p23
    %p30 = scmp.eq.s32.totalorder %s14, 1
    %p31 = por %p29, %p30
    %p32 = scmp.ne.s32.totalorder %s24, %s27
    %p33 = scmp.eq.s32.totalorder %s14, 0
    %p34 = por %p32, %p33
    %p35 = scmp.ne.s32.totalorder %s24, %s27
    %p36 = scmp.eq.s32.totalorder %s19, 1
    %p37 = por %p35, %p36
    %p38 = scmp.ne.s32.totalorder %s27, %s28
    %p39 = scmp.eq.s32.totalorder %s19, 0
    %p40 = por %p38, %p39
    %p41 = scmp.ne.s32.totalorder %s27, %s28
    %p42 = scmp.eq.s32.totalorder %s20, 1
    %p43 = por %p41, %p42
    %p45 = scmp.ne.s32.totalorder %s28, %s44
    %p46 = scmp.eq.s32.totalorder %s20, 0
    %p47 = por %p45, %p46
    %s49 = sadd.s32 %s48, 1
    %p52 = scmp.eq.s32.totalorder %s14, 1
    %p53 = scmp.ne.s32.totalorder %s48, %s50
    %p54 = scmp.eq.s32.totalorder %s14, 0
    %p55 = por %p53, %p54
    %p56 = scmp.ne.s32.totalorder %s48, %s50
    %p57 = scmp.eq.s32.totalorder %s19, 1
    %p58 = por %p56, %p57
    %p59 = scmp.ne.s32.totalorder %s50, %s51
    %p60 = scmp.eq.s32.totalorder %s19, 0
    %p61 = por %p59, %p60
    %p62 = scmp.ne.s32.totalorder %s50, %s51
    %p63 = scmp.eq.s32.totalorder %s20, 1
    %p64 = por %p62, %p63
    %p66 = scmp.ne.s32.totalorder %s51, %s65
    %p67 = scmp.eq.s32.totalorder %s20, 0
    %p68 = por %p66, %p67
    %s70 = sadd.s32 %s69, 1
    %p73 = scmp.eq.s32.totalorder %s14, 1
    %p74 = scmp.ne.s32.totalorder %s69, %s71
    %p75 = scmp.eq.s32.totalorder %s14, 0
    %p76 = por %p74, %p75
    %p77 = scmp.ne.s32.totalorder %s69, %s71
    %p78 = scmp.eq.s32.totalorder %s19, 1
    %p79 = por %p77, %p78
    %p80 = scmp.ne.s32.totalorder %s71, %s72
    %p81 = scmp.eq.s32.totalorder %s19, 0
    %p82 = por %p80, %p81
    %p83 = scmp.ne.s32.totalorder %s71, %s72
    %p84 = scmp.eq.s32.totalorder %s20, 1
    %p85 = por %p83, %p84
    %p87 = scmp.ne.s32.totalorder %s72, %s86
    %p88 = scmp.eq.s32.totalorder %s20, 0
    %p89 = por %p87, %p88
    %s91 = sadd.s32 %s90, 1
    %p94 = scmp.eq.s32.totalorder %s14, 1
    %p95 = scmp.ne.s32.totalorder %s90, %s92
    %p96 = scmp.eq.s32.totalorder %s14, 0
    %p97 = por %p95, %p96
    %p98 = scmp.ne.s32.totalorder %s90, %s92
    %p99 = scmp.eq.s32.totalorder %s19, 1
    %p100 = por %p98, %p99
    %p101 = scmp.ne.s32.totalorder %s92, %s93
    %p102 = scmp.eq.s32.totalorder %s19, 0
    %p103 = por %p101, %p102
    %p104 = scmp.ne.s32.totalorder %s92, %s93
    %p105 = scmp.eq.s32.totalorder %s20, 1
    %p106 = por %p104, %p105
    %p108 = scmp.ne.s32.totalorder %s93, %s107
    %p109 = scmp.eq.s32.totalorder %s20, 0
    %p110 = por %p108, %p109
    %s112 = sadd.s32 %s111, 1
    %p115 = scmp.eq.s32.totalorder %s14, 1
    %p116 = scmp.ne.s32.totalorder %s111, %s113
    %p117 = scmp.eq.s32.totalorder %s14, 0
    %p118 = por %p116, %p117
    %p119 = scmp.ne.s32.totalorder %s111, %s113
    %p120 = scmp.eq.s32.totalorder %s19, 1
    %p121 = por %p119, %p120
    %p122 = scmp.ne.s32.totalorder %s113, %s114
    %p123 = scmp.eq.s32.totalorder %s19, 0
    %p124 = por %p122, %p123
    %p125 = scmp.ne.s32.totalorder %s113, %s114
    %p126 = scmp.eq.s32.totalorder %s20, 1
    %p127 = por %p125, %p126
    %p129 = scmp.ne.s32.totalorder %s114, %s128
    %p130 = scmp.eq.s32.totalorder %s20, 0
    %p131 = por %p129, %p130
    %s133 = sadd.s32 %s132, 1
    %p136 = scmp.eq.s32.totalorder %s14, 1
    %p137 = scmp.ne.s32.totalorder %s132, %s134
    %p138 = scmp.eq.s32.totalorder %s14, 0
    %p139 = por %p137, %p138
    %p140 = scmp.ne.s32.totalorder %s132, %s134
    %p141 = scmp.eq.s32.totalorder %s19, 1
    %p142 = por %p140, %p141
    %p143 = scmp.ne.s32.totalorder %s134, %s135
    %p144 = scmp.eq.s32.totalorder %s19, 0
    %p145 = por %p143, %p144
    %p146 = scmp.ne.s32.totalorder %s134, %s135
    %p147 = scmp.eq.s32.totalorder %s20, 1
    %p148 = por %p146, %p147
    %p150 = scmp.ne.s32.totalorder %s135, %s149
    %p151 = scmp.eq.s32.totalorder %s20, 0
    %p152 = por %p150, %p151
    %s154 = sadd.s32 %s153, 1
    %p157 = scmp.eq.s32.totalorder %s14, 1
    %p158 = scmp.ne.s32.totalorder %s153, %s155
    %p159 = scmp.eq.s32.totalorder %s14, 0
    %p160 = por %p158, %p159
    %p161 = scmp.ne.s32.totalorder %s153, %s155
    %p162 = scmp.eq.s32.totalorder %s19, 1
    %p163 = por %p161, %p162
    %p164 = scmp.ne.s32.totalorder %s155, %s156
    %p165 = scmp.eq.s32.totalorder %s19, 0
    %p166 = por %p164, %p165
    %p167 = scmp.ne.s32.totalorder %s155, %s156
    %p168 = scmp.eq.s32.totalorder %s20, 1
    %p169 = por %p167, %p168
    %p171 = scmp.ne.s32.totalorder %s156, %s170
    %p172 = scmp.eq.s32.totalorder %s20, 0
    %p173 = por %p171, %p172
    %s175 = sadd.s32 %s174, 1
    %p178 = scmp.eq.s32.totalorder %s14, 1
    %p179 = scmp.ne.s32.totalorder %s174, %s176
    %p180 = scmp.eq.s32.totalorder %s14, 0
    %p181 = por %p179, %p180
    %p182 = scmp.ne.s32.totalorder %s174, %s176
    %p183 = scmp.eq.s32.totalorder %s19, 1
    %p184 = por %p182, %p183
    %p185 = scmp.ne.s32.totalorder %s176, %s177
    %p186 = scmp.eq.s32.totalorder %s19, 0
    %p187 = por %p185, %p186
    %p188 = scmp.ne.s32.totalorder %s176, %s177
    %p189 = scmp.eq.s32.totalorder %s20, 1
    %p190 = por %p188, %p189
    %p192 = scmp.ne.s32.totalorder %s177, %s191
    %p193 = scmp.eq.s32.totalorder %s20, 0
    %p194 = por %p192, %p193
    %s195 = ssub.s32 %s14, %s21
    %p196 = scmp.eq.s32.totalorder %s195, 0
    %s198 = sadd.s32 %s197, 1
    %s199 = scalar_select %p196, %s197, %s198
    %p202 = pneg %p196
    %p203 = scmp.eq.s32.totalorder %s14, 1
    %p204 = por %p202, %p203
    %p205 = scmp.ne.s32.totalorder %s197, %s200
    %p206 = scmp.eq.s32.totalorder %s14, 0
    %p207 = por %p205, %p206
    %p208 = scmp.ne.s32.totalorder %s197, %s200
    %p209 = scmp.eq.s32.totalorder %s19, 1
    %p210 = por %p208, %p209
    %p211 = scmp.ne.s32.totalorder %s200, %s201
    %p212 = scmp.eq.s32.totalorder %s19, 0
    %p213 = por %p211, %p212
    %p214 = scmp.ne.s32.totalorder %s200, %s201
    %p215 = scmp.eq.s32.totalorder %s20, 1
    %p216 = por %p214, %p215
    %p218 = scmp.ne.s32.totalorder %s201, %s217
    %p219 = scmp.eq.s32.totalorder %s20, 0
    %p220 = por %p218, %p219
    %p221 = scmp.le.s32.totalorder 1, %s14
    %p222 = scmp.lt.s32.totalorder %s14, 3
    %p223 = pnand %p221, %p222
    %p224 = pneg %p223
    // Predicated region
    $region9: #{upsample_layer_forward.1} parent=5 // pred_check
      _
    $region10: #{upsample_layer_forward.1} parent=5 // pred_check_branch
      %226 = sbr.rel (%p223) target = $region12
    $region11: #{upsample_layer_forward.1} parent=5 // pred_region
      %s227 = ssub.s32 %s14, 1
      // Predicated region
      $region13: #{upsample_layer_forward.1} parent=11 // pred_check
        %p228 = pneg %p61
      $region14: #{upsample_layer_forward.1} parent=11 // pred_check_branch
        %230 = sbr.rel (%p228) target = $region16
      $region15: #{upsample_layer_forward.1} parent=11 // pred_region
        _
      $region16: #{upsample_layer_forward.1} parent=11 // pred_fallthru
        _
      // Predicated region
      $region17: #{upsample_layer_forward.1} parent=11 // pred_check
        %p231 = pneg %p82
      $region18: #{upsample_layer_forward.1} parent=11 // pred_check_branch
        %233 = sbr.rel (%p231) target = $region20
      $region19: #{upsample_layer_forward.1} parent=11 // pred_region
        _
      $region20: #{upsample_layer_forward.1} parent=11 // pred_fallthru
        _
      // Predicated region
      $region21: #{upsample_layer_forward.1} parent=11 // pred_check
        %p234 = pneg %p103
      $region22: #{upsample_layer_forward.1} parent=11 // pred_check_branch
        %236 = sbr.rel (%p234) target = $region24
      $region23: #{upsample_layer_forward.1} parent=11 // pred_region
        _
      $region24: #{upsample_layer_forward.1} parent=11 // pred_fallthru
        _
      // Predicated region
      $region25: #{upsample_layer_forward.1} parent=11 // pred_check
        %p237 = pneg %p124
      $region26: #{upsample_layer_forward.1} parent=11 // pred_check_branch
        %239 = sbr.rel (%p237) target = $region28
      $region27: #{upsample_layer_forward.1} parent=11 // pred_region
        _
      $region28: #{upsample_layer_forward.1} parent=11 // pred_fallthru
        _
      // Predicated region
      $region29: #{upsample_layer_forward.1} parent=11 // pred_check
        %p240 = pneg %p145
      $region30: #{upsample_layer_forward.1} parent=11 // pred_check_branch
        %242 = sbr.rel (%p240) target = $region32
      $region31: #{upsample_layer_forward.1} parent=11 // pred_region
        _
      $region32: #{upsample_layer_forward.1} parent=11 // pred_fallthru
        _
      // Predicated region
      $region33: #{upsample_layer_forward.1} parent=11 // pred_check
        %p243 = pneg %p166
      $region34: #{upsample_layer_forward.1} parent=11 // pred_check_branch
        %245 = sbr.rel (%p243) target = $region36
      $region35: #{upsample_layer_forward.1} parent=11 // pred_region
        _
      $region36: #{upsample_layer_forward.1} parent=11 // pred_fallthru
        _
      // Predicated region
      $region37: #{upsample_layer_forward.1} parent=11 // pred_check
        %p246 = pneg %p187
      $region38: #{upsample_layer_forward.1} parent=11 // pred_check_branch
        %248 = sbr.rel (%p246) target = $region40
      $region39: #{upsample_layer_forward.1} parent=11 // pred_region
        _
      $region40: #{upsample_layer_forward.1} parent=11 // pred_fallthru
        _
    $region12: #{upsample_layer_forward.1} parent=5 // pred_fallthru
      _
    %p249 = scmp.lt.s32.totalorder %s14, 2
    // Predicated region
    $region41: #{upsample_layer_forward.1} parent=5 // pred_check
      %p250 = pneg %p249
    $region42: #{upsample_layer_forward.1} parent=5 // pred_check_branch
      %252 = sbr.rel (%p250) target = $region44
    $region43: #{upsample_layer_forward.1} parent=5 // pred_region
      // Predicated region
      $region45: #{upsample_layer_forward.1} parent=43 // pred_check
        %p253 = pneg %p34
      $region46: #{upsample_layer_forward.1} parent=43 // pred_check_branch
        %255 = sbr.rel (%p253) target = $region48
      $region47: #{upsample_layer_forward.1} parent=43 // pred_region
        %p256 = scmp.lt.s32.totalorder %s14, 1
        %s257 = scalar_select %p256, %s14, 1
        %s258 = smul.addr %s257, 15
        %s259 = smul.addr %s258, 8
        %s260 = scalar_lea.vmem %s0, %s259
      $region48: #{upsample_layer_forward.1} parent=43 // pred_fallthru
        _
    $region44: #{upsample_layer_forward.1} parent=5 // pred_fallthru
      _
    %p261 = scmp.le.s32.totalorder 1, %s14
    %p262 = scmp.lt.s32.totalorder %s14, 3
    %p263 = pnand %p261, %p262
    %p264 = pneg %p263
    // Predicated region
    $region49: #{upsample_layer_forward.1} parent=5 // pred_check
      _
    $region50: #{upsample_layer_forward.1} parent=5 // pred_check_branch
      %266 = sbr.rel (%p263) target = $region52
    $region51: #{upsample_layer_forward.1} parent=5 // pred_region
      %s267 = ssub.s32 %s14, 1
      %p268 = scmp.lt.s32.totalorder %s19, 1
      %s269 = scalar_select %p268, %s19, 1
      %s270 = smul.addr %s269, 15
      %s271 = smul.addr %s270, 8
      %s272 = scalar_lea.vmem %s0, %s271
      %p273 = pneg %p40
      %p274 = pneg %p37
      %p275 = pneg %p61
      %p276 = pneg %p58
      %p277 = pneg %p82
      %p278 = pneg %p79
      %p279 = pneg %p103
      %p280 = pneg %p100
      %p281 = pneg %p124
      %p282 = pneg %p121
      %p283 = pneg %p145
      %p284 = pneg %p142
      %p285 = pneg %p166
      %p286 = pneg %p163
      %p287 = pneg %p187
      %p288 = pneg %p184
      %p289 = pneg %p213
      %p290 = pneg %p210
      %p291 = scmp.lt.s32.totalorder %s19, 1
      %s292 = scalar_select %p291, %s19, 1
      %s293 = smul.addr %s292, 6
      %s294 = smul.addr %s293, 8
      %s295 = scalar_lea.vmem %s8, %s294
      %p296 = scmp.lt.s32.totalorder %s19, 1
      %s297 = scalar_select %p296, %s19, 1
      %s298 = smul.addr %s297, 15
      %s299 = smul.addr %s298, 8
      %s300 = scalar_lea.vmem %s0, %s299
      %p301 = scmp.lt.s32.totalorder %s19, 1
      %s302 = scalar_select %p301, %s19, 1
      %s303 = smul.addr %s302, 6
      %s304 = smul.addr %s303, 8
      %s305 = scalar_lea.vmem %s8, %s304
      %v306 = vld [vmem:[%s1] sm:$0xff]
      %v307 = vld [vmem:[%s1 + $0x8] sm:$0xff]
      %v308 = vld [vmem:[%s1 + $0x10] sm:$0xff]
      %v309 = vld [vmem:[%s2] sm:$0xff]
      %v310 = vld [vmem:[%s300] sm:$0xff]
      %v311 = vld [vmem:[%s300 + $0x8] sm:$0xff]
      %v312 = vld [vmem:[%s300 + $0x10] sm:$0xff]
      %v313 = vld [vmem:[%s300 + $0x18] sm:$0xff]
      %v314 = vld [vmem:[%s300 + $0x20] sm:$0xff]
      %v315 = vld [vmem:[%s300 + $0x28] sm:$0xff]
      %v316 = vld [vmem:[%s300 + $0x30] sm:$0xff]
      %v317 = vld [vmem:[%s300 + $0x38] sm:$0xff]
      %v318 = vld [vmem:[%s300 + $0x40] sm:$0xff]
      %v319 = vld [vmem:[%s300 + $0x48] sm:$0xff]
      %v320 = vld [vmem:[%s300 + $0x50] sm:$0xff]
      %v321 = vld [vmem:[%s300 + $0x58] sm:$0xff]
      %v322 = vld [vmem:[%s300 + $0x60] sm:$0xf]
      %v323 = vld [vmem:[%s300 + $0x68] sm:$0xf]
      %v324 = vld [vmem:[%s300 + $0x70] sm:$0xf]
      %v325 = vld [vmem:[%s3] sm:$0xff]
      %327 = vset.pattern.permute.xlu0 0
      %328 = vperm.xlu0 %327, %v325
      %v329 = vpop.permute.xlu0 %328
      %vm331 = vcmask 293888
      %v333 = vsel %vm331, %v309, 0
      %vm335 = vcmask 1043456
      %v337 = vsel %vm335, %v322, 0
      %v340 = vsel %vm335, %v323, 0
      %v343 = vsel %vm335, %v324, 0
      %345 = vmatpush.msra.mxu0 0.0
      %346 = vmatpush.msra.mxu0 0.0
      %347 = vmatpush.msra.mxu0 0.0
      %348 = vmatpush.msra.mxu0 0.0
      %349 = vmatpush.msra.mxu0 0.0
      %350 = vmatpush.msra.mxu0 0.0
      %351 = vmatpush.msra.mxu0 0.0
      %352 = vmatpush.msra.mxu0 0.0
      %353 = vmatpush.msra.mxu0 0.0
      %354 = vmatpush.msra.mxu0 0.0
      %355 = vmatpush.msra.mxu0 0.0
      %356 = vmatpush.msra.mxu0 %v337
      %357 = vmatpush.msra.mxu0 %v319
      %358 = vmatpush.msra.mxu0 %v316
      %359 = vmatpush.msra.mxu0 %v313
      %360 = vmatpush.msra.mxu0 %v310
      %361 = vmatmul.f32.gmra.mxu0 %v333
      %v362 = vpop.f32.mrf.mxu0
      %v363 = vadd.f32 %v329, %v362
      %364 = vdwg.mxu0
      %365 = vmatpush.msra.mxu0 0.0
      %366 = vmatpush.msra.mxu0 0.0
      %367 = vmatpush.msra.mxu0 0.0
      %368 = vmatpush.msra.mxu0 0.0
      %369 = vmatpush.msra.mxu0 0.0
      %370 = vmatpush.msra.mxu0 0.0
      %371 = vmatpush.msra.mxu0 0.0
      %372 = vmatpush.msra.mxu0 0.0
      %373 = vmatpush.msra.mxu0 0.0
      %374 = vmatpush.msra.mxu0 0.0
      %375 = vmatpush.msra.mxu0 0.0
      %376 = vmatpush.msra.mxu0 %v340
      %377 = vmatpush.msra.mxu0 %v320
      %378 = vmatpush.msra.mxu0 %v317
      %379 = vmatpush.msra.mxu0 %v314
      %380 = vmatpush.msra.mxu0 %v311
      %381 = vmatmul.f32.gmra.mxu0 %v333
      %v382 = vpop.f32.mrf.mxu0
      %v383 = vadd.f32 %v329, %v382
      %384 = vdwg.mxu0
      %385 = vmatpush.msra.mxu0 0.0
      %386 = vmatpush.msra.mxu0 0.0
      %387 = vmatpush.msra.mxu0 0.0
      %388 = vmatpush.msra.mxu0 0.0
      %389 = vmatpush.msra.mxu0 0.0
      %390 = vmatpush.msra.mxu0 0.0
      %391 = vmatpush.msra.mxu0 0.0
      %392 = vmatpush.msra.mxu0 0.0
      %393 = vmatpush.msra.mxu0 0.0
      %394 = vmatpush.msra.mxu0 0.0
      %395 = vmatpush.msra.mxu0 0.0
      %396 = vmatpush.msra.mxu0 %v343
      %397 = vmatpush.msra.mxu0 %v321
      %398 = vmatpush.msra.mxu0 %v318
      %399 = vmatpush.msra.mxu0 %v315
      %400 = vmatpush.msra.mxu0 %v312
      %401 = vmatmul.f32.gmra.mxu0 %v333
      %v402 = vpop.f32.mrf.mxu0
      %v403 = vadd.f32 %v329, %v402
      %404 = vdwg.mxu0
      %v405 = vmax.f32 %v363, 0.0
      %v406 = vmax.f32 %v383, 0.0
      %v407 = vmax.f32 %v403, 0.0
      %v408 = vmul.f32 %v405, %v306
      %v409 = vmul.f32 %v406, %v307
      %v410 = vmul.f32 %v407, %v308
      %411 = vrot.lane.b32.xlu0 %v408, 19
      %v412 = vpop.permute.xlu0 %411
      %413 = vrot.lane.b32.xlu0 %v409, 19
      %v414 = vpop.permute.xlu0 %413
      %415 = vrot.lane.b32.xlu0 %v410, 19
      %v416 = vpop.permute.xlu0 %415
      %v417 = vlaneseq
      %v418 = vand.u32 %v417, 127
      %vm419 = vcmp.lt.s32.totalorder %v418, 19
      %v420 = vsel %vm419, %v414, %v416
      %v421 = vsel %vm419, %v412, %v414
      %v422 = vsel %vm419, %v416, %v412
      %423 = vrot.lane.b32.xlu0 %v408, 18
      %v424 = vpop.permute.xlu0 %423
      %425 = vrot.lane.b32.xlu0 %v409, 18
      %v426 = vpop.permute.xlu0 %425
      %427 = vrot.lane.b32.xlu0 %v410, 18
      %v428 = vpop.permute.xlu0 %427
      %vm429 = vcmp.lt.s32.totalorder %v418, 18
      %v430 = vsel %vm429, %v426, %v428
      %v431 = vsel %vm429, %v424, %v426
      %v432 = vsel %vm429, %v428, %v424
      %433 = vrot.lane.b32.xlu0 %v408, 17
      %v434 = vpop.permute.xlu0 %433
      %435 = vrot.lane.b32.xlu0 %v409, 17
      %v436 = vpop.permute.xlu0 %435
      %437 = vrot.lane.b32.xlu0 %v410, 17
      %v438 = vpop.permute.xlu0 %437
      %vm439 = vcmp.lt.s32.totalorder %v418, 17
      %v440 = vsel %vm439, %v436, %v438
      %v441 = vsel %vm439, %v434, %v436
      %v442 = vsel %vm439, %v438, %v434
      %443 = vrot.lane.b32.xlu0 %v408, 1
      %v444 = vpop.permute.xlu0 %443
      %445 = vrot.lane.b32.xlu0 %v409, 1
      %v446 = vpop.permute.xlu0 %445
      %447 = vrot.lane.b32.xlu0 %v410, 1
      %v448 = vpop.permute.xlu0 %447
      %vm449 = vcmp.lt.s32.totalorder %v418, 1
      %v450 = vsel %vm449, %v446, %v448
      %v451 = vsel %vm449, %v444, %v446
      %v452 = vsel %vm449, %v448, %v444
      %453 = vrot.lane.b32.xlu0 %v408, 127
      %v454 = vpop.permute.xlu0 %453
      %455 = vrot.lane.b32.xlu0 %v409, 127
      %v456 = vpop.permute.xlu0 %455
      %457 = vrot.lane.b32.xlu0 %v410, 127
      %v458 = vpop.permute.xlu0 %457
      %vm459 = vcmp.lt.s32.totalorder %v418, 127
      %v460 = vsel %vm459, %v456, %v458
      %v461 = vsel %vm459, %v454, %v456
      %v462 = vsel %vm459, %v458, %v454
      %463 = vrot.lane.b32.xlu0 %v408, 111
      %v464 = vpop.permute.xlu0 %463
      %465 = vrot.lane.b32.xlu0 %v409, 111
      %v466 = vpop.permute.xlu0 %465
      %467 = vrot.lane.b32.xlu0 %v410, 111
      %v468 = vpop.permute.xlu0 %467
      %vm469 = vcmp.lt.s32.totalorder %v418, 111
      %v470 = vsel %vm469, %v466, %v468
      %v471 = vsel %vm469, %v464, %v466
      %v472 = vsel %vm469, %v468, %v464
      %473 = vrot.lane.b32.xlu0 %v408, 110
      %v474 = vpop.permute.xlu0 %473
      %475 = vrot.lane.b32.xlu0 %v409, 110
      %v476 = vpop.permute.xlu0 %475
      %477 = vrot.lane.b32.xlu0 %v410, 110
      %v478 = vpop.permute.xlu0 %477
      %vm479 = vcmp.lt.s32.totalorder %v418, 110
      %v480 = vsel %vm479, %v476, %v478
      %v481 = vsel %vm479, %v474, %v476
      %v482 = vsel %vm479, %v478, %v474
      %483 = vrot.lane.b32.xlu0 %v408, 109
      %v484 = vpop.permute.xlu0 %483
      %485 = vrot.lane.b32.xlu0 %v409, 109
      %v486 = vpop.permute.xlu0 %485
      %487 = vrot.lane.b32.xlu0 %v410, 109
      %v488 = vpop.permute.xlu0 %487
      %vm489 = vcmp.lt.s32.totalorder %v418, 109
      %v490 = vsel %vm489, %v486, %v488
      %v491 = vsel %vm489, %v484, %v486
      %v492 = vsel %vm489, %v488, %v484
      %v493 = vld [vmem:[%s4] sm:$0xff]
      %v494 = vld [vmem:[%s5] sm:$0xff]
      %496 = vset.pattern.permute.xlu0 0
      %497 = vperm.xlu0 %496, %v494
      %v498 = vpop.permute.xlu0 %497
      %vm500 = vcmask 588800
      %v502 = vsel %vm500, %v493, 0
      %504 = vmatpush.msra.mxu0 0.0
      %505 = vmatpush.msra.mxu0 0.0
      %506 = vmatpush.msra.mxu0 0.0
      %507 = vmatpush.msra.mxu0 0.0
      %508 = vmatpush.msra.mxu0 0.0
      %509 = vmatpush.msra.mxu0 0.0
      %510 = vmatpush.msra.mxu0 0.0
      %511 = vmatpush.msra.mxu0 %v491
      %512 = vmatpush.msra.mxu0 %v481
      %513 = vmatpush.msra.mxu0 %v471
      %514 = vmatpush.msra.mxu0 %v461
      %515 = vmatpush.msra.mxu0 %v408
      %516 = vmatpush.msra.mxu0 %v452
      %517 = vmatpush.msra.mxu0 %v442
      %518 = vmatpush.msra.mxu0 %v432
      %519 = vmatpush.msra.mxu0 %v422
      %520 = vmatmul.f32.gmra.mxu0 %v502
      %v521 = vpop.f32.mrf.mxu0
      %v522 = vadd.f32 %v498, %v521
      %523 = vdwg.mxu0
      %524 = vmatpush.msra.mxu0 0.0
      %525 = vmatpush.msra.mxu0 0.0
      %526 = vmatpush.msra.mxu0 0.0
      %527 = vmatpush.msra.mxu0 0.0
      %528 = vmatpush.msra.mxu0 0.0
      %529 = vmatpush.msra.mxu0 0.0
      %530 = vmatpush.msra.mxu0 0.0
      %531 = vmatpush.msra.mxu0 %v490
      %532 = vmatpush.msra.mxu0 %v480
      %533 = vmatpush.msra.mxu0 %v470
      %534 = vmatpush.msra.mxu0 %v460
      %535 = vmatpush.msra.mxu0 %v409
      %536 = vmatpush.msra.mxu0 %v451
      %537 = vmatpush.msra.mxu0 %v441
      %538 = vmatpush.msra.mxu0 %v431
      %539 = vmatpush.msra.mxu0 %v421
      %540 = vmatmul.f32.gmra.mxu0 %v502
      %v541 = vpop.f32.mrf.mxu0
      %v542 = vadd.f32 %v498, %v541
      %543 = vdwg.mxu0
      %544 = vmatpush.msra.mxu0 0.0
      %545 = vmatpush.msra.mxu0 0.0
      %546 = vmatpush.msra.mxu0 0.0
      %547 = vmatpush.msra.mxu0 0.0
      %548 = vmatpush.msra.mxu0 0.0
      %549 = vmatpush.msra.mxu0 0.0
      %550 = vmatpush.msra.mxu0 0.0
      %551 = vmatpush.msra.mxu0 %v492
      %552 = vmatpush.msra.mxu0 %v482
      %553 = vmatpush.msra.mxu0 %v472
      %554 = vmatpush.msra.mxu0 %v462
      %555 = vmatpush.msra.mxu0 %v410
      %556 = vmatpush.msra.mxu0 %v450
      %557 = vmatpush.msra.mxu0 %v440
      %558 = vmatpush.msra.mxu0 %v430
      %559 = vmatpush.msra.mxu0 %v420
      %560 = vmatmul.f32.gmra.mxu0 %v502
      %v561 = vpop.f32.mrf.mxu0
      %v562 = vadd.f32 %v498, %v561
      %563 = vdwg.mxu0
      %v564 = vmax.f32 %v522, 0.0
      %v565 = vmax.f32 %v542, 0.0
      %v566 = vmax.f32 %v562, 0.0
      %v567 = vmul.f32 %v564, %v306
      %v568 = vmul.f32 %v565, %v307
      %v569 = vmul.f32 %v566, %v308
      %570 = vrot.lane.b32.xlu0 %v567, 127
      %v571 = vpop.permute.xlu0 %570
      %572 = vrot.lane.b32.xlu0 %v568, 127
      %v573 = vpop.permute.xlu0 %572
      %574 = vrot.lane.b32.xlu0 %v569, 127
      %v575 = vpop.permute.xlu0 %574
      %v576 = vsel %vm459, %v573, %v575
      %v577 = vsel %vm459, %v571, %v573
      %v578 = vsel %vm459, %v575, %v571
      %579 = vrot.lane.b32.xlu0 %v567, 110
      %v580 = vpop.permute.xlu0 %579
      %581 = vrot.lane.b32.xlu0 %v568, 110
      %v582 = vpop.permute.xlu0 %581
      %583 = vrot.lane.b32.xlu0 %v569, 110
      %v584 = vpop.permute.xlu0 %583
      %v585 = vsel %vm479, %v582, %v584
      %v586 = vsel %vm479, %v580, %v582
      %v587 = vsel %vm479, %v584, %v580
      %588 = vrot.lane.b32.xlu0 %v567, 109
      %v589 = vpop.permute.xlu0 %588
      %590 = vrot.lane.b32.xlu0 %v568, 109
      %v591 = vpop.permute.xlu0 %590
      %592 = vrot.lane.b32.xlu0 %v569, 109
      %v593 = vpop.permute.xlu0 %592
      %v594 = vsel %vm489, %v591, %v593
      %v595 = vsel %vm489, %v589, %v591
      %v596 = vsel %vm489, %v593, %v589
      %v597 = vld [vmem:[%s6] sm:$0xff]
      %v598 = vld [vmem:[%s6 + $0x8] sm:$0xff]
      %v599 = vld [vmem:[%s7] sm:$0xff]
      %v600 = vld [vmem:[%s7 + $0x8] sm:$0xff]
      %602 = vset.pattern.permute.xlu0 0
      %603 = vperm.xlu0 %602, %v599
      %v604 = vpop.permute.xlu0 %603
      %607 = vset.pattern.permute.xlu0 0
      %608 = vperm.xlu0 %607, %v600
      %v609 = vpop.permute.xlu0 %608
      %vm611 = vcmask 261120
      %v613 = vsel %vm611, %v597, 0
      %v616 = vsel %vm611, %v598, 0
      %618 = vmatpush.msra.mxu0 0.0
      %619 = vmatpush.msra.mxu0 0.0
      %620 = vmatpush.msra.mxu0 0.0
      %621 = vmatpush.msra.mxu0 0.0
      %622 = vmatpush.msra.mxu0 0.0
      %623 = vmatpush.msra.mxu0 0.0
      %624 = vmatpush.msra.mxu0 0.0
      %625 = vmatpush.msra.mxu0 0.0
      %626 = vmatpush.msra.mxu0 0.0
      %627 = vmatpush.msra.mxu0 0.0
      %628 = vmatpush.msra.mxu0 0.0
      %629 = vmatpush.msra.mxu0 0.0
      %630 = vmatpush.msra.mxu0 %v595
      %631 = vmatpush.msra.mxu0 %v586
      %632 = vmatpush.msra.mxu0 %v577
      %633 = vmatpush.msra.mxu0 %v567
      %634 = vmatmul.f32.gmra.mxu0 %v613
      %v635 = vpop.f32.mrf.mxu0
      %v636 = vadd.f32 %v604, %v635
      %637 = vmatmul.f32.gmra.mxu0 %v616
      %v638 = vpop.f32.mrf.mxu0
      %v639 = vadd.f32 %v609, %v638
      %640 = vdwg.mxu0
      %641 = vmatpush.msra.mxu0 0.0
      %642 = vmatpush.msra.mxu0 0.0
      %643 = vmatpush.msra.mxu0 0.0
      %644 = vmatpush.msra.mxu0 0.0
      %645 = vmatpush.msra.mxu0 0.0
      %646 = vmatpush.msra.mxu0 0.0
      %647 = vmatpush.msra.mxu0 0.0
      %648 = vmatpush.msra.mxu0 0.0
      %649 = vmatpush.msra.mxu0 0.0
      %650 = vmatpush.msra.mxu0 0.0
      %651 = vmatpush.msra.mxu0 0.0
      %652 = vmatpush.msra.mxu0 0.0
      %653 = vmatpush.msra.mxu0 %v594
      %654 = vmatpush.msra.mxu0 %v585
      %655 = vmatpush.msra.mxu0 %v576
      %656 = vmatpush.msra.mxu0 %v568
      %657 = vmatmul.f32.gmra.mxu0 %v613
      %v658 = vpop.f32.mrf.mxu0
      %v659 = vadd.f32 %v604, %v658
      %660 = vmatmul.f32.gmra.mxu0 %v616
      %v661 = vpop.f32.mrf.mxu0
      %v662 = vadd.f32 %v609, %v661
      %663 = vdwg.mxu0
      %664 = vmatpush.msra.mxu0 0.0
      %665 = vmatpush.msra.mxu0 0.0
      %666 = vmatpush.msra.mxu0 0.0
      %667 = vmatpush.msra.mxu0 0.0
      %668 = vmatpush.msra.mxu0 0.0
      %669 = vmatpush.msra.mxu0 0.0
      %670 = vmatpush.msra.mxu0 0.0
      %671 = vmatpush.msra.mxu0 0.0
      %672 = vmatpush.msra.mxu0 0.0
      %673 = vmatpush.msra.mxu0 0.0
      %674 = vmatpush.msra.mxu0 0.0
      %675 = vmatpush.msra.mxu0 0.0
      %676 = vmatpush.msra.mxu0 %v596
      %677 = vmatpush.msra.mxu0 %v587
      %678 = vmatpush.msra.mxu0 %v578
      %679 = vmatpush.msra.mxu0 %v569
      %680 = vmatmul.f32.gmra.mxu0 %v613
      %v681 = vpop.f32.mrf.mxu0
      %v682 = vadd.f32 %v604, %v681
      %683 = vmatmul.f32.gmra.mxu0 %v616
      %v684 = vpop.f32.mrf.mxu0
      %v685 = vadd.f32 %v609, %v684
      %686 = vdwg.mxu0
      %v687 = vmax.f32 %v636, 0.0
      %v688 = vmax.f32 %v659, 0.0
      %v689 = vmax.f32 %v682, 0.0
      %v690 = vmax.f32 %v639, 0.0
      %v691 = vmax.f32 %v662, 0.0
      %v692 = vmax.f32 %v685, 0.0
      %693 = vst [vmem:[%s305] sm:$0xff] %v687
      %694 = vst [vmem:[%s305 + $0x8] sm:$0xff] %v688
      %695 = vst [vmem:[%s305 + $0x10] sm:$0xff] %v689
      %696 = vst [vmem:[%s305 + $0x18] sm:$0xff] %v690
      %697 = vst [vmem:[%s305 + $0x20] sm:$0xff] %v691
      %698 = vst [vmem:[%s305 + $0x28] sm:$0xff] %v692
      %p699 = scmp.lt.s32.totalorder %s19, 1
      %s700 = scalar_select %p699, %s19, 1
      %s701 = smul.addr %s700, 6
      %s702 = smul.addr %s701, 8
      %s703 = scalar_lea.vmem %s8, %s702
      // Predicated region
      $region53: #{upsample_layer_forward.1} parent=51 // pred_check
        %p704 = pneg %p210
      $region54: #{upsample_layer_forward.1} parent=51 // pred_check_branch
        %706 = sbr.rel (%p704) target = $region56
      $region55: #{upsample_layer_forward.1} parent=51 // pred_region
        _
      $region56: #{upsample_layer_forward.1} parent=51 // pred_fallthru
        _
    $region52: #{upsample_layer_forward.1} parent=5 // pred_fallthru
      _
    %p707 = scmp.le.s32.totalorder 2, %s14
    // Predicated region
    $region57: #{upsample_layer_forward.1} parent=5 // pred_check
      %p708 = pneg %p707
    $region58: #{upsample_layer_forward.1} parent=5 // pred_check_branch
      %710 = sbr.rel (%p708) target = $region60
    $region59: #{upsample_layer_forward.1} parent=5 // pred_region
      %s711 = ssub.s32 %s14, 2
      // Predicated region
      $region61: #{upsample_layer_forward.1} parent=59 // pred_check
        %p712 = pneg %p216
      $region62: #{upsample_layer_forward.1} parent=59 // pred_check_branch
        %714 = sbr.rel (%p712) target = $region64
      $region63: #{upsample_layer_forward.1} parent=59 // pred_region
        %p715 = scmp.lt.s32.totalorder %s20, 1
        %s716 = scalar_select %p715, %s20, 1
        %s717 = smul.addr %s716, 6
        %s718 = smul.addr %s717, 8
        %s719 = scalar_lea.vmem %s8, %s718
      $region64: #{upsample_layer_forward.1} parent=59 // pred_fallthru
        _
    $region60: #{upsample_layer_forward.1} parent=5 // pred_fallthru
      _
  $region6: #{upsample_layer_forward.1} parent=0 // loop_footer
    %s18 = sadd.s32 1, %s14
  $region7: #{upsample_layer_forward.1} parent=0 // loop_footer_branch
    %13 = sbr.rel target = $region3
  $region8: #{upsample_layer_forward.1} parent=0 // loop_exit
    _

</llo_original>
